<compile_context>
chip_gen: v7x
topology: tpu7x:2x2x1
jax: 0.10.0
libtpu: 0.0.40
codegen_flags: <defaults>
</compile_context>

<pallas_src>
import functools

import jax
import jax.numpy as jnp
from jax import lax
from jax.experimental import pallas as pl
from jax.experimental.pallas import tpu as pltpu

_LANE = 128
_SUBLANE = 8


def _round_up(v: int, m: int) -> int:
    return ((v + m - 1) // m) * m


def _vmem_capacity_bytes() -> int:
    try:
        cap = getattr(pltpu.get_tpu_info(), "vmem_capacity_bytes", None)
        if cap:
            return int(cap)
    except Exception:
        pass
    return 64 * 1024 * 1024  # conservative fallback (v7x per-TensorCore VMEM)


def init_state(n_features: int):
    """OnlineCovMatrix buffers (mean, covmat_aggregate, obs), carried lane-padded.

    State is kept at Fp = round_up(n_features, 128) so every update is lane-dense and the
    covmat/mean buffers alias exactly across calls (padded rows/cols stay identically 0).
    get_covmat() slices back to (n_features, n_features).
    """
    fp = _round_up(max(n_features, 1), _LANE)
    mean = jnp.zeros((1, fp), jnp.float32)
    cov = jnp.zeros((fp, fp), jnp.float32)
    obs = jnp.zeros((1,), jnp.int32)
    return mean, cov, obs


def _make_kernel(F, Fp, SB, total_rows, pad_feat, has_tail):
    def kernel(obs_ref, x_ref, mean_ref, cov_hbm_ref,
               new_cov_ref, new_mean_ref, new_obs_ref,
               dma_sem, *pad_scratch):
        s = pl.program_id(0)

        @pl.when(s == 0)
        def _init():
            # One-shot DMA of the incoming aggregate straight into the VMEM-resident
            # output block (no auto-pipelined (Fp,Fp) input buffer).
            cp = pltpu.make_async_copy(cov_hbm_ref, new_cov_ref, dma_sem)
            cp.start()
            cp.wait()
            new_mean_ref[...] = mean_ref[...]
            if pad_feat:
                pad_scratch[0][...] = jnp.zeros_like(pad_scratch[0])

        obs0 = obs_ref[0]
        # Every step before this one processed exactly SB rows.
        obs_f = (obs0 + s * SB).astype(jnp.float32)

        if pad_feat:
            xpad_ref = pad_scratch[0]
            xpad_ref[:, 0:F] = x_ref[...].astype(jnp.float32)  # padded lanes stay zero
            x = xpad_ref[...]
        else:
            x = x_ref[...].astype(jnp.float32)                  # delta_dtype = float32

        if has_tail:
            row = lax.broadcasted_iota(jnp.int32, (SB, 1), 0) + s * SB
            valid = row < total_rows
            n_f = jnp.minimum(SB, total_rows - s * SB).astype(jnp.float32)
            x = jnp.where(valid, x, 0.0)                        # NaN-safe tail masking
        else:
            n_f = jnp.float32(SB)

        mean = new_mean_ref[...]                                # (1, Fp) running mean
        sum_x = jnp.sum(x, axis=0, keepdims=True)               # (1, Fp)
        # new_mean = (mean*obs + batch_mean*n) / (obs + n);  batch_mean*n == sum_x
        new_mean = (mean * obs_f + sum_x) / (obs_f + n_f)

        delta = x - mean
        delta_prime = x - new_mean
        if has_tail:
            delta = jnp.where(valid, delta, 0.0)
            delta_prime = jnp.where(valid, delta_prime, 0.0)

        # einsum('ij,ik->jk'): contract over the SB rows on the MXU (K = SB >> 16).
        outer = lax.dot_general(
            delta, delta_prime,
            dimension_numbers=(((0,), (0,)), ((), ())),
            preferred_element_type=jnp.float32,
        )
        new_cov_ref[...] += outer
        new_mean_ref[...] = new_mean

        @pl.when(s == pl.num_programs(0) - 1)
        def _fin():
            new_obs_ref[0] = obs0 + total_rows

    return kernel


@functools.partial(jax.jit, static_argnames=("block_rows",), donate_argnums=(1, 2))
def online_covmat_update_stream(xs, mean, covmat_aggregate, obs, *, block_rows=None):
    """Apply the OnlineCovMatrix update for a whole stream of batches in ONE pallas_call.

    xs:   (num_chunks, B, F) float -- xs[i] is one forward() batch (merged exactly per step)
    mean / covmat_aggregate / obs: lane-padded state from init_state()
    Returns (new_covmat_aggregate, new_mean, new_obs) at the padded state shapes.
    """
    num_chunks, B, F = xs.shape
    Fp = covmat_aggregate.shape[0]
    assert covmat_aggregate.shape == (Fp, Fp) and mean.shape == (1, Fp)
    assert Fp % _LANE == 0 and F <= Fp, "state must be lane-padded (use init_state)"
    total_rows = num_chunks * B
    assert total_rows > 0

    # Free reshape; NO host-side pad of the stream (would be an extra HBM read+write).
    x_flat = xs.reshape(total_rows, F).astype(jnp.float32)

    # Super-batch rows per grid step: ~1 MiB of streamed x, multiple of 8, in [8, 2048].
    if block_rows is None:
        sb = min(max(256, (1 << 20) // max(F * 4, 1)), 2048)
    else:
        sb = int(block_rows)
    sb = min(sb, _round_up(total_rows, _SUBLANE))
    sb = max(_SUBLANE, (sb // _SUBLANE) * _SUBLANE)

    num_steps = pl.cdiv(total_rows, sb)
    has_tail = (total_rows % sb) != 0
    pad_feat = (F != Fp)

    cov_bytes = Fp * Fp * 4
    est_vmem = (2 * cov_bytes                        # resident accumulator (assume 2 bufs)
                + 2 * sb * F * 4                     # double-buffered x stream
                + (sb * Fp * 4 if pad_feat else 0)   # in-kernel lane-padding scratch
                + 4 * Fp * 4 + (1 << 20))
    vmem_cap = _vmem_capacity_bytes()
    vmem_limit = int(min(max(est_vmem + (8 << 20), 32 << 20), 0.85 * vmem_cap))

    scratch_shapes = [pltpu.SemaphoreType.DMA]
    if pad_feat:
        scratch_shapes.append(pltpu.VMEM((sb, Fp), jnp.float32))

    kernel = _make_kernel(F, Fp, sb, total_rows, pad_feat, has_tail)

    new_cov, new_mean, new_obs = pl.pallas_call(
        kernel,
        out_shape=(
            jax.ShapeDtypeStruct((Fp, Fp), jnp.float32),   # covmat_aggregate
            jax.ShapeDtypeStruct((1, Fp), jnp.float32),    # mean
            jax.ShapeDtypeStruct((1,), jnp.int32),         # obs
        ),
        grid=(num_steps,),
        in_specs=[
            pl.BlockSpec(memory_space=pltpu.MemorySpace.SMEM),   # obs (scalar)
            pl.BlockSpec((sb, F), lambda s: (s, 0)),             # x super-batch (streamed)
            pl.BlockSpec((1, Fp), lambda s: (0, 0)),             # mean (fetched once)
            pl.BlockSpec(memory_space=pl.ANY),                   # covmat: manual one-shot DMA
        ],
        out_specs=(
            pl.BlockSpec((Fp, Fp), lambda s: (0, 0)),            # VMEM-resident accumulator
            pl.BlockSpec((1, Fp), lambda s: (0, 0)),             # VMEM-resident running mean
            pl.BlockSpec(memory_space=pltpu.MemorySpace.SMEM),
        ),
        scratch_shapes=scratch_shapes,
        # covmat -> new covmat, mean -> new mean: true in-place update (with jit donation).
        input_output_aliases={3: 0, 2: 1},
        compiler_params=pltpu.CompilerParams(
            dimension_semantics=("arbitrary",),
            vmem_limit_bytes=vmem_limit,
        ),
    )(obs, x_flat, mean, covmat_aggregate)

    return new_cov, new_mean, new_obs


def online_covmat_update(x, mean, covmat_aggregate, obs):
    """One OnlineCovMatrix.forward() step (a single (B, F) batch)."""
    return online_covmat_update_stream(x[None], mean, covmat_aggregate, obs)


def get_covmat(covmat_aggregate, obs, n_features, correlation=False):
    """OnlineCovMatrix.get_covmat on the (padded) aggregate state (plain-JAX glue)."""
    obs_f = jnp.asarray(obs, jnp.float32).reshape(())
    cov = covmat_aggregate[:n_features, :n_features] / (obs_f - 1.0)
    if correlation:
        d_inv = 1.0 / jnp.sqrt(jnp.diag(cov))
        return cov * d_inv[:, None] * d_inv[None, :]
    return cov


def _reference_update(x, mean, covmat, obs):
    """Pure-JAX mirror of the torch.jit.script update_covmat (one batch)."""
    n = x.shape[0]
    obs_f = obs.astype(jnp.float32)
    batch_mean = jnp.mean(x, axis=0, keepdims=True)
    new_mean = (mean * obs_f + batch_mean * n) / (obs_f + n)
    delta = x - mean
    delta_prime = x - new_mean
    new_cov = covmat + jnp.einsum("ij,ik->jk", delta, delta_prime,
                                  precision=jax.lax.Precision.HIGHEST)
    return new_cov, new_mean, obs + n


if __name__ == "__main__":
    n_features = 32
    batch = 16
    num_batches = 8

    mean, covmat, obs = init_state(n_features)

    key = jax.random.PRNGKey(0)
    k1, k2, k3 = jax.random.split(key, 3)
    xs = jax.random.normal(k1, (num_batches, batch, n_features), jnp.float32) * 1.5 + 0.25
    x_extra = jax.random.normal(k2, (batch, n_features), jnp.float32) * 2.0 - 0.5

    # A stream of num_batches forward() calls fused into ONE pallas_call ...
    covmat, mean, obs = online_covmat_update_stream(xs, mean, covmat, obs)
    # ... plus one more standalone forward() call through the same kernel.
    covmat, mean, obs = online_covmat_update(x_extra, mean, covmat, obs)
    jax.block_until_ready((covmat, mean, obs))

    # Pure-JAX reference: torch update_covmat applied batch-by-batch.
    r_cov = jnp.zeros((n_features, n_features), jnp.float32)
    r_mean = jnp.zeros((1, n_features), jnp.float32)
    r_obs = jnp.zeros((1,), jnp.int32)
    for i in range(num_batches):
        r_cov, r_mean, r_obs = _reference_update(xs[i], r_mean, r_cov, r_obs)
    r_cov, r_mean, r_obs = _reference_update(x_extra, r_mean, r_cov, r_obs)

    got_cov = covmat[:n_features, :n_features]
    got_mean = mean[:, :n_features]
    scale = float(jnp.max(jnp.abs(r_cov))) + 1.0
    err = float(jnp.max(jnp.abs(got_cov - r_cov)))
    assert err <= 5e-3 * scale, (err, scale)
    assert jnp.allclose(got_mean, r_mean, atol=1e-4, rtol=1e-4)
    assert int(obs[0]) == int(r_obs[0]) == (num_batches + 1) * batch
    # Padded rows/cols of the carried state stay identically zero.
    assert float(jnp.max(jnp.abs(covmat[n_features:, :]))) == 0.0
    assert float(jnp.max(jnp.abs(covmat[:, n_features:]))) == 0.0

    # Second config: multi-step grid with a ragged tail (block_rows=48 over 112 rows gives
    # 3 steps, the last partially masked) - exercises the row-mask + padding-scratch paths.
    mean2, covmat2, obs2 = init_state(n_features)
    xs2 = jax.random.normal(k3, (7, batch, n_features), jnp.float32) - 0.1
    covmat2, mean2, obs2 = online_covmat_update_stream(
        xs2, mean2, covmat2, obs2, block_rows=48)
    jax.block_until_ready((covmat2, mean2, obs2))

    r_cov2 = jnp.zeros((n_features, n_features), jnp.float32)
    r_mean2 = jnp.zeros((1, n_features), jnp.float32)
    r_obs2 = jnp.zeros((1,), jnp.int32)
    for i in range(7):
        r_cov2, r_mean2, r_obs2 = _reference_update(xs2[i], r_mean2, r_cov2, r_obs2)

    scale2 = float(jnp.max(jnp.abs(r_cov2))) + 1.0
    err2 = float(jnp.max(jnp.abs(covmat2[:n_features, :n_features] - r_cov2)))
    assert err2 <= 5e-3 * scale2, (err2, scale2)
    assert jnp.allclose(mean2[:, :n_features], r_mean2, atol=1e-4, rtol=1e-4)
    assert int(obs2[0]) == int(r_obs2[0]) == 7 * batch

    # get_covmat / correlation on the accumulated state (plain JAX glue).
    _ = jax.block_until_ready(get_covmat(covmat, obs, n_features))
    _ = jax.block_until_ready(get_covmat(covmat, obs, n_features, correlation=True))

    print("KERNEL_OK")
</pallas_src>

<mosaic_0001>
module attributes {stable_mosaic.version = 11 : i64} {
  func.func @kernel(%arg0: i32, %arg1: memref<1xi32, #tpu.memory_space<smem>>, %arg2: memref<128x32xf32, #tpu.memory_space<vmem>>, %arg3: memref<1x128xf32, #tpu.memory_space<vmem>>, %arg4: memref<128x128xf32, #tpu.memory_space<any>>, %arg5: memref<128x128xf32, #tpu.memory_space<vmem>>, %arg6: memref<1x128xf32, #tpu.memory_space<vmem>>, %arg7: memref<1xi32, #tpu.memory_space<smem>>, %arg8: memref<!tpu.dma_semaphore, #tpu.memory_space<semaphore_mem>>, %arg9: memref<128x128xf32, #tpu.memory_space<vmem>>) attributes {dimension_semantics = [#tpu.dimension_semantics<arbitrary>], iteration_bounds = array<i64: 1>, scalar_prefetch = 0 : i64, scratch_operands = 2 : i64, tpu.core_type = #tpu.core_type<tc>, window_params = [{transform_indices = @transform_0, window_bounds = array<i64: 1>}, {transform_indices = @transform_1, window_bounds = array<i64: 128, 32>}, {pipeline_mode = #tpu.pipeline_mode<synchronous>, transform_indices = @transform_2, window_bounds = array<i64: 1, 128>}, {}, {pipeline_mode = #tpu.pipeline_mode<synchronous>, transform_indices = @transform_4, window_bounds = array<i64: 128, 128>}, {pipeline_mode = #tpu.pipeline_mode<synchronous>, transform_indices = @transform_5, window_bounds = array<i64: 1, 128>}, {transform_indices = @transform_6, window_bounds = array<i64: 1>}]} {
    %c0_i32 = arith.constant 0 : i32
    %0 = arith.cmpi eq, %arg0, %c0_i32 : i32
    %1 = arith.extui %0 : i1 to i32
    %c0_i32_0 = arith.constant 0 : i32
    %2 = arith.cmpi ne, %1, %c0_i32_0 : i32
    scf.if %2 {
      tpu.enqueue_dma source(%arg4 : memref<128x128xf32, #tpu.memory_space<any>>) target(%arg5 : memref<128x128xf32, #tpu.memory_space<vmem>>) target_semaphore(%arg8 : memref<!tpu.dma_semaphore, #tpu.memory_space<semaphore_mem>>)
      tpu.wait_dma2 semaphore(%arg8 : memref<!tpu.dma_semaphore, #tpu.memory_space<semaphore_mem>>) src(%arg4 : memref<128x128xf32, #tpu.memory_space<any>>) dst(%arg5 : memref<128x128xf32, #tpu.memory_space<vmem>>)
      %c0_19 = arith.constant 0 : index
      %c0_20 = arith.constant 0 : index
      %31 = vector.load %arg3[%c0_19, %c0_20] : memref<1x128xf32, #tpu.memory_space<vmem>>, vector<1x128xf32>
      %c0_21 = arith.constant 0 : index
      %c0_22 = arith.constant 0 : index
      %32 = vector.load %arg6[%c0_21, %c0_22] : memref<1x128xf32, #tpu.memory_space<vmem>>, vector<1x128xf32>
      tpu.vector_store %arg6[%c0_21, %c0_22], %31 {strides = array<i32>} : memref<1x128xf32, #tpu.memory_space<vmem>>, vector<1x128xf32>,
      %cst_23 = arith.constant 0.000000e+00 : f32
      %33 = vector.broadcast %cst_23 : f32 to vector<128x128xf32>
      %c0_24 = arith.constant 0 : index
      %c0_25 = arith.constant 0 : index
      %34 = vector.load %arg9[%c0_24, %c0_25] : memref<128x128xf32, #tpu.memory_space<vmem>>, vector<128x128xf32>
      tpu.vector_store %arg9[%c0_24, %c0_25], %33 {strides = array<i32>} : memref<128x128xf32, #tpu.memory_space<vmem>>, vector<128x128xf32>,
    } else {
    }
    %c0 = arith.constant 0 : index
    %3 = memref.load %arg1[%c0] : memref<1xi32, #tpu.memory_space<smem>>
    %c128_i32 = arith.constant 128 : i32
    %4 = arith.muli %arg0, %c128_i32 : i32
    %5 = arith.addi %3, %4 : i32
    %6 = arith.sitofp %5 : i32 to f32
    %c0_1 = arith.constant 0 : index
    %c0_2 = arith.constant 0 : index
    %7 = vector.load %arg2[%c0_1, %c0_2] : memref<128x32xf32, #tpu.memory_space<vmem>>, vector<128x32xf32>
    %c0_3 = arith.constant 0 : index
    %c0_4 = arith.constant 0 : index
    %8 = vector.load %arg9[%c0_3, %c0_4] : memref<128x128xf32, #tpu.memory_space<vmem>>, vector<128x32xf32>
    tpu.vector_store %arg9[%c0_3, %c0_4], %7 {strides = array<i32>} : memref<128x128xf32, #tpu.memory_space<vmem>>, vector<128x32xf32>,
    %c0_5 = arith.constant 0 : index
    %c0_6 = arith.constant 0 : index
    %9 = vector.load %arg9[%c0_5, %c0_6] : memref<128x128xf32, #tpu.memory_space<vmem>>, vector<128x128xf32>
    %c0_7 = arith.constant 0 : index
    %c0_8 = arith.constant 0 : index
    %10 = vector.load %arg6[%c0_7, %c0_8] : memref<1x128xf32, #tpu.memory_space<vmem>>, vector<1x128xf32>
    %cst = arith.constant dense<0.000000e+00> : vector<128xf32>
    %11 = vector.multi_reduction <add>, %9, %cst [0] : vector<128x128xf32> to vector<128xf32>
    %12 = vector.shape_cast %11 : vector<128xf32> to vector<1x128xf32>
    %13 = vector.broadcast %6 : f32 to vector<1x128xf32>
    %14 = arith.mulf %10, %13 : vector<1x128xf32>
    %15 = arith.addf %14, %12 : vector<1x128xf32>
    %cst_9 = arith.constant 1.280000e+02 : f32
    %16 = arith.addf %6, %cst_9 : f32
    %17 = vector.broadcast %16 : f32 to vector<1x128xf32>
    %18 = arith.divf %15, %17 : vector<1x128xf32>
    %19 = vector.broadcast %10 : vector<1x128xf32> to vector<128x128xf32>
    %20 = arith.subf %9, %19 : vector<128x128xf32>
    %21 = vector.broadcast %18 : vector<1x128xf32> to vector<128x128xf32>
    %22 = arith.subf %9, %21 : vector<128x128xf32>
    %cst_10 = arith.constant dense<0.000000e+00> : vector<128x128xf32>
    %23 = tpu.matmul %20, %22, %cst_10 {dimension_numbers = #tpu.dot_dimension_numbers<[0], [0], [1], [1], [0, 1, 1, 1], [], []>} : vector<128x128xf32>, vector<128x128xf32>, vector<128x128xf32> -> vector<128x128xf32>
    %c0_11 = arith.constant 0 : index
    %c0_12 = arith.constant 0 : index
    %24 = vector.load %arg5[%c0_11, %c0_12] : memref<128x128xf32, #tpu.memory_space<vmem>>, vector<128x128xf32>
    %25 = arith.addf %24, %23 : vector<128x128xf32>
    %c0_13 = arith.constant 0 : index
    %c0_14 = arith.constant 0 : index
    %26 = vector.load %arg5[%c0_13, %c0_14] : memref<128x128xf32, #tpu.memory_space<vmem>>, vector<128x128xf32>
    tpu.vector_store %arg5[%c0_13, %c0_14], %25 {strides = array<i32>} : memref<128x128xf32, #tpu.memory_space<vmem>>, vector<128x128xf32>,
    %c0_15 = arith.constant 0 : index
    %c0_16 = arith.constant 0 : index
    %27 = vector.load %arg6[%c0_15, %c0_16] : memref<1x128xf32, #tpu.memory_space<vmem>>, vector<1x128xf32>
    tpu.vector_store %arg6[%c0_15, %c0_16], %18 {strides = array<i32>} : memref<1x128xf32, #tpu.memory_space<vmem>>, vector<1x128xf32>,
    %c0_i32_17 = arith.constant 0 : i32
    %28 = arith.cmpi eq, %arg0, %c0_i32_17 : i32
    %29 = arith.extui %28 : i1 to i32
    %c0_i32_18 = arith.constant 0 : i32
    %30 = arith.cmpi ne, %29, %c0_i32_18 : i32
    scf.if %30 {
      %c128_i32_19 = arith.constant 128 : i32
      %31 = arith.addi %3, %c128_i32_19 : i32
      %c0_20 = arith.constant 0 : index
      %32 = memref.load %arg7[%c0_20] : memref<1xi32, #tpu.memory_space<smem>>
      memref.store %31, %arg7[%c0_20] : memref<1xi32, #tpu.memory_space<smem>>
    } else {
    }
    return
  }
  func.func @transform_0(%arg0: i32) -> i32 {
    %c0_i32 = arith.constant 0 : i32
    %c0_i32_0 = arith.constant 0 : i32
    return %c0_i32 : i32
  }
  func.func @transform_1(%arg0: i32) -> (i32, i32) {
    %c0_i32 = arith.constant 0 : i32
    %c0_i32_0 = arith.constant 0 : i32
    return %arg0, %c0_i32 : i32, i32
  }
  func.func @transform_2(%arg0: i32) -> (i32, i32) {
    %c0_i32 = arith.constant 0 : i32
    %c0_i32_0 = arith.constant 0 : i32
    %c0_i32_1 = arith.constant 0 : i32
    return %c0_i32, %c0_i32_0 : i32, i32
  }
  func.func @transform_4(%arg0: i32) -> (i32, i32) {
    %c0_i32 = arith.constant 0 : i32
    %c0_i32_0 = arith.constant 0 : i32
    %c0_i32_1 = arith.constant 0 : i32
    return %c0_i32, %c0_i32_0 : i32, i32
  }
  func.func @transform_5(%arg0: i32) -> (i32, i32) {
    %c0_i32 = arith.constant 0 : i32
    %c0_i32_0 = arith.constant 0 : i32
    %c0_i32_1 = arith.constant 0 : i32
    return %c0_i32, %c0_i32_0 : i32, i32
  }
  func.func @transform_6(%arg0: i32) -> i32 {
    %c0_i32 = arith.constant 0 : i32
    %c0_i32_0 = arith.constant 0 : i32
    return %c0_i32 : i32
  }
}

</mosaic_0001>

<llo_original>
// kernel: online_covmat_update_stream.1
$region0: #{online_covmat_update_stream.1}
  #allocation0 [shape = 'u32[]', space=smem, size = 0x4, offset = 0x4, fixed_abs, tag = 'smem constant byte address 0x4 - core index']
  #allocation1 [shape = 'u32[144,128]{1,0:T(1,128)}', space=vmem, size = 0x12000, scoped, tag = 'internal scratch']
  #allocation2 [shape = 's32[1]{0}', space=sflag, size = 0x4, scoped, tag = 'scratch operand']
  #allocation3 [shape = 'f32[128,128]{1,0:T(8,128)}', space=vmem, size = 0x10000, scoped, tag = 'scratch operand']
  #allocation4 [shape = 's32[1]{0:T(128)S(6)}', space=smem, size = 0x200, scoped, tag = 'scoped memory for online_covmat_update_stream.1']
  #allocation15 [shape = 's32[]', space=sflag, size = 0x4, offset = 0, fixed_abs, tag = 'sflag constant byte address 0x0 - dummy sync flag']
  #allocation16 [shape = 's32[]', space=sflag, size = 0x4, offset = 0, fixed_abs, tag = 'sflag constant byte address 0x0 - dummy sync flag']
  #allocation17 [shape = 'u32[]', space=smem, size = 0x4, offset = 0x44, fixed_abs, tag = 'smem constant byte address 0x44 - assertion arg 0']
  #allocation18 [shape = 'u32[]', space=smem, size = 0x4, offset = 0x48, fixed_abs, tag = 'smem constant byte address 0x48 - assertion arg 1']
  %s0 = inlined_call_operand.<no memory space> [shape: s32[1], index: 0, kind: input, shape index: {}]
  %s1 = inlined_call_operand.hbm [shape: f32[128,32], index: 1, kind: input, shape index: {}]
  %s2 = inlined_call_operand.hbm [shape: f32[1,128], index: 2, kind: input, shape index: {}, may-alias: {2,5}]
  %s3 = inlined_call_operand.hbm [shape: f32[128,128], index: 3, kind: input, shape index: {}, may-alias: {3,4}]
  %s4 = inlined_call_operand.hbm [shape: f32[128,128], index: 4, kind: output, shape index: {0}, may-alias: {3,4}]
  %s5 = inlined_call_operand.hbm [shape: f32[1,128], index: 5, kind: output, shape index: {1}, may-alias: {2,5}]
  %s6 = inlined_call_operand.hbm [shape: s32[1], index: 6, kind: output, shape index: {2}]
  %7 = xla_tuple %s4, %s5, %s6
  %s8 = sld [smem:[#allocation0]]
  $region58: #{online_covmat_update_stream.1} parent=0
    _
  %s10 = ssub.s32 1, %s8
  %s11 = scalar_select 0, %s10, %s8
  %12 = sst [smem:[#allocation4]] %s0
  $region1: #{online_covmat_update_stream.1} parent=0
    #allocation5 [shape = 'u8[65536]{0}', space=vmem, size = 0x10000, scoped, tag = 'input window, operand 1, single buffered']
    #allocation6 [shape = 's32[1]{0}', space=sflag, size = 0x4, scoped, tag = 'scoped memory for online_covmat_update_stream.1']
    #allocation7 [shape = 's32[1]{0}', space=sflag, size = 0x4, scoped, tag = 'scoped memory for online_covmat_update_stream.1']
    #allocation8 [shape = 's32[1]{0}', space=sflag, size = 0x4, scoped, tag = 'scoped memory for online_covmat_update_stream.1']
    #allocation9 [shape = 'u8[512]{0}', space=vmem, size = 0x400, scoped, tag = 'input window, operand 2, single buffered']
    #allocation10 [shape = 's32[1]{0}', space=sflag, size = 0x4, scoped, tag = 'scoped memory for online_covmat_update_stream.1']
    #allocation11 [shape = 'u8[65536]{0}', space=vmem, size = 0x10000, scoped, tag = 'output window, operand 0, single buffered']
    #allocation12 [shape = 'u8[512]{0}', space=vmem, size = 0x400, scoped, tag = 'output window, operand 1, single buffered']
    #allocation13 [shape = 's32[1]{0}', space=sflag, size = 0x4, scoped, tag = 'scoped memory for online_covmat_update_stream.1']
    #allocation14 [shape = 'u8[512]{0}', space=smem, size = 0x200, scoped, tag = 'output window, operand 2, single buffered']
    %13 = vsyncpa [#allocation6], 0
    %14 = vsyncpa [#allocation10], 0
    %15 = vsyncpa [#allocation7], 0
    %16 = vsyncpa [#allocation13], 0
    %17 = vsyncpa [#allocation8], 0
    // Predicated region
    $region2: #{online_covmat_update_stream.1} parent=1 // pred_check
      _
    $region3: #{online_covmat_update_stream.1} parent=1 // pred_check_branch
      %19 = sbr.rel (0) target = $region5
    $region4: #{online_covmat_update_stream.1} parent=1 // pred_region
      _
    $region5: #{online_covmat_update_stream.1} parent=1 // pred_fallthru
      _
    // Predicated region
    $region6: #{online_covmat_update_stream.1} parent=1 // pred_check
      _
    $region7: #{online_covmat_update_stream.1} parent=1 // pred_check_branch
      %21 = sbr.rel (0) target = $region9
    $region8: #{online_covmat_update_stream.1} parent=1 // pred_region
      %s23 = ssub.s32 2048, 2048
      %24 = vsyncadd [#allocation6], %s23
      %s25 = sshll.u32 [#allocation5], 4
      %s26 = int_to_ptr.vmem [resolvable:$true] %s25
      %31 = dma.hbm_to_vmem [thread:$0]  %s1, 2048, %s26, [#allocation6], 128, 128, 8
    $region9: #{online_covmat_update_stream.1} parent=1 // pred_fallthru
      _
    // Predicated region
    $region10: #{online_covmat_update_stream.1} parent=1 // pred_check
      _
    $region11: #{online_covmat_update_stream.1} parent=1 // pred_check_branch
      %33 = sbr.rel (0) target = $region13
    $region12: #{online_covmat_update_stream.1} parent=1 // pred_region
      %s35 = ssub.s32 16, 16
      %36 = vsyncadd [#allocation10], %s35
      %s38 = sshll.u32 [#allocation9], 4
      %s39 = int_to_ptr.vmem [resolvable:$true] %s38
      %41 = dma.hbm_to_vmem [thread:$0]  %s2, 16, %s39, [#allocation10]
    $region13: #{online_covmat_update_stream.1} parent=1 // pred_fallthru
      _
    // Predicated region
    $region14: #{online_covmat_update_stream.1} parent=1 // pred_check
      _
    $region15: #{online_covmat_update_stream.1} parent=1 // pred_check_branch
      %43 = sbr.rel (0) target = $region17
    $region16: #{online_covmat_update_stream.1} parent=1 // pred_region
      %44 = dma.done [#allocation6], 2048
    $region17: #{online_covmat_update_stream.1} parent=1 // pred_fallthru
      _
    // Predicated region
    $region18: #{online_covmat_update_stream.1} parent=1 // pred_check
      _
    $region19: #{online_covmat_update_stream.1} parent=1 // pred_check_branch
      %46 = sbr.rel (0) target = $region21
    $region20: #{online_covmat_update_stream.1} parent=1 // pred_region
      %47 = dma.done [#allocation10], 16
    $region21: #{online_covmat_update_stream.1} parent=1 // pred_fallthru
      _
    %p48 = scmp.eq.s32.totalorder 0, 0
    // Predicated region
    $region22: #{online_covmat_update_stream.1} parent=1 // pred_check
      %p49 = pneg %p48
    $region23: #{online_covmat_update_stream.1} parent=1 // pred_check_branch
      %51 = sbr.rel (%p49) target = $region25
    $region24: #{online_covmat_update_stream.1} parent=1 // pred_region
      // Predicated region
      $region26: #{online_covmat_update_stream.1} parent=24 // pred_check
        _
      $region27: #{online_covmat_update_stream.1} parent=24 // pred_check_branch
        %53 = sbr.rel target = $region29
      $region28: #{online_covmat_update_stream.1} parent=24 // pred_region
        %54 = sst [smem:[#allocation17]] [#allocation16]
        %55 = sst [smem:[#allocation18]] [#allocation15]
      $region29: #{online_covmat_update_stream.1} parent=24 // pred_fallthru
        _
      %57 = shalt.err (0)
      %s59 = sshll.u32 [#allocation11], 4
      %s60 = int_to_ptr.vmem [resolvable:$true] %s59
      %62 = dma.hbm_to_vmem [thread:$0]  %s3, 2048, %s60, [#allocation2]
      %s63 = smul.u32 128, 1
      %s64 = sshll.u32 %s63, 4
      %65 = dma.done [#allocation2], %s64
      %v66 = vld [vmem:[#allocation9] sm:$0x1]
      %67 = vst [vmem:[#allocation12] sm:$0x1] %v66
      %68 = vst [vmem:[#allocation3] sm:$0xff] 0.0
      %69 = vst [vmem:[#allocation3 + $0x8] sm:$0xff] 0.0
      %70 = vst [vmem:[#allocation3 + $0x10] sm:$0xff] 0.0
      %71 = vst [vmem:[#allocation3 + $0x18] sm:$0xff] 0.0
      %72 = vst [vmem:[#allocation3 + $0x20] sm:$0xff] 0.0
      %73 = vst [vmem:[#allocation3 + $0x28] sm:$0xff] 0.0
      %74 = vst [vmem:[#allocation3 + $0x30] sm:$0xff] 0.0
      %75 = vst [vmem:[#allocation3 + $0x38] sm:$0xff] 0.0
      %76 = vst [vmem:[#allocation3 + $0x40] sm:$0xff] 0.0
      %77 = vst [vmem:[#allocation3 + $0x48] sm:$0xff] 0.0
      %78 = vst [vmem:[#allocation3 + $0x50] sm:$0xff] 0.0
      %79 = vst [vmem:[#allocation3 + $0x58] sm:$0xff] 0.0
      %80 = vst [vmem:[#allocation3 + $0x60] sm:$0xff] 0.0
      %81 = vst [vmem:[#allocation3 + $0x68] sm:$0xff] 0.0
      %82 = vst [vmem:[#allocation3 + $0x70] sm:$0xff] 0.0
      %83 = vst [vmem:[#allocation3 + $0x78] sm:$0xff] 0.0
    $region25: #{online_covmat_update_stream.1} parent=1 // pred_fallthru
      _
    %s84 = sld [smem:[#allocation4]]
    %s85 = smul.u32 0, 128
    %s86 = sadd.s32 %s84, %s85
    %s87 = scvt.s32.f32 %s86
    %v88 = vld [vmem:[#allocation5] sm:$0xff]
    %v89 = vld [vmem:[#allocation5 + $0x8] sm:$0xff]
    %v90 = vld [vmem:[#allocation5 + $0x10] sm:$0xff]
    %v91 = vld [vmem:[#allocation5 + $0x18] sm:$0xff]
    %v92 = vld [vmem:[#allocation5 + $0x20] sm:$0xff]
    %v93 = vld [vmem:[#allocation5 + $0x28] sm:$0xff]
    %v94 = vld [vmem:[#allocation5 + $0x30] sm:$0xff]
    %v95 = vld [vmem:[#allocation5 + $0x38] sm:$0xff]
    %v96 = vld [vmem:[#allocation5 + $0x40] sm:$0xff]
    %v97 = vld [vmem:[#allocation5 + $0x48] sm:$0xff]
    %v98 = vld [vmem:[#allocation5 + $0x50] sm:$0xff]
    %v99 = vld [vmem:[#allocation5 + $0x58] sm:$0xff]
    %v100 = vld [vmem:[#allocation5 + $0x60] sm:$0xff]
    %v101 = vld [vmem:[#allocation5 + $0x68] sm:$0xff]
    %v102 = vld [vmem:[#allocation5 + $0x70] sm:$0xff]
    %v103 = vld [vmem:[#allocation5 + $0x78] sm:$0xff]
    %vm104 = vcmask 261120
    %105 = vst.msk [vmem:[#allocation3] sm:$0xff] %vm104, %v88
    %106 = vst.msk [vmem:[#allocation3 + $0x8] sm:$0xff] %vm104, %v89
    %107 = vst.msk [vmem:[#allocation3 + $0x10] sm:$0xff] %vm104, %v90
    %108 = vst.msk [vmem:[#allocation3 + $0x18] sm:$0xff] %vm104, %v91
    %109 = vst.msk [vmem:[#allocation3 + $0x20] sm:$0xff] %vm104, %v92
    %110 = vst.msk [vmem:[#allocation3 + $0x28] sm:$0xff] %vm104, %v93
    %111 = vst.msk [vmem:[#allocation3 + $0x30] sm:$0xff] %vm104, %v94
    %112 = vst.msk [vmem:[#allocation3 + $0x38] sm:$0xff] %vm104, %v95
    %113 = vst.msk [vmem:[#allocation3 + $0x40] sm:$0xff] %vm104, %v96
    %114 = vst.msk [vmem:[#allocation3 + $0x48] sm:$0xff] %vm104, %v97
    %115 = vst.msk [vmem:[#allocation3 + $0x50] sm:$0xff] %vm104, %v98
    %116 = vst.msk [vmem:[#allocation3 + $0x58] sm:$0xff] %vm104, %v99
    %117 = vst.msk [vmem:[#allocation3 + $0x60] sm:$0xff] %vm104, %v100
    %118 = vst.msk [vmem:[#allocation3 + $0x68] sm:$0xff] %vm104, %v101
    %119 = vst.msk [vmem:[#allocation3 + $0x70] sm:$0xff] %vm104, %v102
    %120 = vst.msk [vmem:[#allocation3 + $0x78] sm:$0xff] %vm104, %v103
    %v121 = vld [vmem:[#allocation3] sm:$0xff]
    %v122 = vld [vmem:[#allocation3 + $0x8] sm:$0xff]
    %v123 = vld [vmem:[#allocation3 + $0x10] sm:$0xff]
    %v124 = vld [vmem:[#allocation3 + $0x18] sm:$0xff]
    %v125 = vld [vmem:[#allocation3 + $0x20] sm:$0xff]
    %v126 = vld [vmem:[#allocation3 + $0x28] sm:$0xff]
    %v127 = vld [vmem:[#allocation3 + $0x30] sm:$0xff]
    %v128 = vld [vmem:[#allocation3 + $0x38] sm:$0xff]
    %v129 = vld [vmem:[#allocation3 + $0x40] sm:$0xff]
    %v130 = vld [vmem:[#allocation3 + $0x48] sm:$0xff]
    %v131 = vld [vmem:[#allocation3 + $0x50] sm:$0xff]
    %v132 = vld [vmem:[#allocation3 + $0x58] sm:$0xff]
    %v133 = vld [vmem:[#allocation3 + $0x60] sm:$0xff]
    %v134 = vld [vmem:[#allocation3 + $0x68] sm:$0xff]
    %v135 = vld [vmem:[#allocation3 + $0x70] sm:$0xff]
    %v136 = vld [vmem:[#allocation3 + $0x78] sm:$0xff]
    %v137 = vld [vmem:[#allocation12] sm:$0x1]
    %v138 = vadd.f32 %v121, %v122
    %v139 = vadd.f32 %v138, %v123
    %v140 = vadd.f32 %v139, %v124
    %v141 = vadd.f32 %v140, %v125
    %v142 = vadd.f32 %v141, %v126
    %v143 = vadd.f32 %v142, %v127
    %v144 = vadd.f32 %v143, %v128
    %v145 = vadd.f32 %v144, %v129
    %v146 = vadd.f32 %v145, %v130
    %v147 = vadd.f32 %v146, %v131
    %v148 = vadd.f32 %v147, %v132
    %v149 = vadd.f32 %v148, %v133
    %v150 = vadd.f32 %v149, %v134
    %v151 = vadd.f32 %v150, %v135
    %v152 = vadd.f32 %v151, %v136
    %v153 = vrot.slane %v152, 4
    %v154 = vadd.f32 %v152, %v153
    %v155 = vrot.slane %v154, 2
    %v156 = vadd.f32 %v154, %v155
    %v157 = vrot.slane %v156, 1
    %v158 = vadd.f32 %v156, %v157
    %v159 = vstv %s87
    %v160 = vmul.f32 %v137, %v159
    %v161 = vadd.f32 %v160, %v158
    %s162 = sadd.f32 %s87, 128.0
    %v163 = vstv %s162
    %v164 = vrcp.pop %v163
    %v165 = vmul.f32 %v161, %v164
    %v167 = vlaneseq
    %v168 = vshrl.u32 %v167, 7
    %v169 = vsub.s32 0, %v168
    %v170 = vrot.slane %v137, %v169
    %v172 = vsub.f32 %v121, %v170
    %v173 = vsub.f32 %v122, %v170
    %v174 = vsub.f32 %v123, %v170
    %v175 = vsub.f32 %v124, %v170
    %v176 = vsub.f32 %v125, %v170
    %v177 = vsub.f32 %v126, %v170
    %v178 = vsub.f32 %v127, %v170
    %v179 = vsub.f32 %v128, %v170
    %v180 = vsub.f32 %v129, %v170
    %v181 = vsub.f32 %v130, %v170
    %v182 = vsub.f32 %v131, %v170
    %v183 = vsub.f32 %v132, %v170
    %v184 = vsub.f32 %v133, %v170
    %v185 = vsub.f32 %v134, %v170
    %v186 = vsub.f32 %v135, %v170
    %v187 = vsub.f32 %v136, %v170
    %v189 = vlaneseq
    %v190 = vshrl.u32 %v189, 7
    %v191 = vsub.s32 0, %v190
    %v192 = vrot.slane %v165, %v191
    %v194 = vsub.f32 %v121, %v192
    %v195 = vsub.f32 %v122, %v192
    %v196 = vsub.f32 %v123, %v192
    %v197 = vsub.f32 %v124, %v192
    %v198 = vsub.f32 %v125, %v192
    %v199 = vsub.f32 %v126, %v192
    %v200 = vsub.f32 %v127, %v192
    %v201 = vsub.f32 %v128, %v192
    %v202 = vsub.f32 %v129, %v192
    %v203 = vsub.f32 %v130, %v192
    %v204 = vsub.f32 %v131, %v192
    %v205 = vsub.f32 %v132, %v192
    %v206 = vsub.f32 %v133, %v192
    %v207 = vsub.f32 %v134, %v192
    %v208 = vsub.f32 %v135, %v192
    %v209 = vsub.f32 %v136, %v192
    %210 = vxpose.xlu0.b32.start [1/16] %v172, 128
    %211 = vxpose.xlu0.b32.cont [2/16] %v173, 128
    %212 = vxpose.xlu0.b32.cont [3/16] %v174, 128
    %213 = vxpose.xlu0.b32.cont [4/16] %v175, 128
    %214 = vxpose.xlu0.b32.cont [5/16] %v176, 128
    %215 = vxpose.xlu0.b32.cont [6/16] %v177, 128
    %216 = vxpose.xlu0.b32.cont [7/16] %v178, 128
    %217 = vxpose.xlu0.b32.cont [8/16] %v179, 128
    %218 = vxpose.xlu0.b32.cont [9/16] %v180, 128
    %219 = vxpose.xlu0.b32.cont [10/16] %v181, 128
    %220 = vxpose.xlu0.b32.cont [11/16] %v182, 128
    %221 = vxpose.xlu0.b32.cont [12/16] %v183, 128
    %222 = vxpose.xlu0.b32.cont [13/16] %v184, 128
    %223 = vxpose.xlu0.b32.cont [14/16] %v185, 128
    %224 = vxpose.xlu0.b32.cont [15/16] %v186, 128
    %225 = vxpose.xlu0.b32.end [16/16] %v187, 128
    %v226 = vpop.trf.xlu0
    %v227 = vpop.trf.xlu0
    %v228 = vpop.trf.xlu0
    %v229 = vpop.trf.xlu0
    %v230 = vpop.trf.xlu0
    %v231 = vpop.trf.xlu0
    %v232 = vpop.trf.xlu0
    %v233 = vpop.trf.xlu0
    %v234 = vpop.trf.xlu0
    %v235 = vpop.trf.xlu0
    %v236 = vpop.trf.xlu0
    %v237 = vpop.trf.xlu0
    %v238 = vpop.trf.xlu0
    %v239 = vpop.trf.xlu0
    %v240 = vpop.trf.xlu0
    %v241 = vpop.trf.xlu0
    %242 = vmatprep.subr.mxu0 0.0
    %243 = vmatpush1.msra.mxu0 %v194
    %244 = vmatprep.subr.mxu0 0.0
    %245 = vmatpush1.msra.mxu0 %v195
    %246 = vmatprep.subr.mxu0 0.0
    %247 = vmatpush1.msra.mxu0 %v196
    %248 = vmatprep.subr.mxu0 0.0
    %249 = vmatpush1.msra.mxu0 %v197
    %250 = vmatprep.subr.mxu0 0.0
    %251 = vmatpush1.msra.mxu0 %v198
    %252 = vmatprep.subr.mxu0 0.0
    %253 = vmatpush1.msra.mxu0 %v199
    %254 = vmatprep.subr.mxu0 0.0
    %255 = vmatpush1.msra.mxu0 %v200
    %256 = vmatprep.subr.mxu0 0.0
    %257 = vmatpush1.msra.mxu0 %v201
    %258 = vmatprep.subr.mxu0 0.0
    %259 = vmatpush1.msra.mxu0 %v202
    %260 = vmatprep.subr.mxu0 0.0
    %261 = vmatpush1.msra.mxu0 %v203
    %262 = vmatprep.subr.mxu0 0.0
    %263 = vmatpush1.msra.mxu0 %v204
    %264 = vmatprep.subr.mxu0 0.0
    %265 = vmatpush1.msra.mxu0 %v205
    %266 = vmatprep.subr.mxu0 0.0
    %267 = vmatpush1.msra.mxu0 %v206
    %268 = vmatprep.subr.mxu0 0.0
    %269 = vmatpush1.msra.mxu0 %v207
    %270 = vmatprep.subr.mxu0 0.0
    %271 = vmatpush1.msra.mxu0 %v208
    %272 = vmatprep.subr.mxu0 0.0
    %273 = vmatpush1.msra.mxu0 %v209
    %274 = vmatprep.subr.mxu0 0.0
    %275 = vmatpush1.msra.mxu0 0.0
    %276 = vmatprep.subr.mxu0 0.0
    %277 = vmatpush1.msra.mxu0 0.0
    %278 = vmatprep.subr.mxu0 0.0
    %279 = vmatpush1.msra.mxu0 0.0
    %280 = vmatprep.subr.mxu0 0.0
    %281 = vmatpush1.msra.mxu0 0.0
    %282 = vmatprep.subr.mxu0 0.0
    %283 = vmatpush1.msra.mxu0 0.0
    %284 = vmatprep.subr.mxu0 0.0
    %285 = vmatpush1.msra.mxu0 0.0
    %286 = vmatprep.subr.mxu0 0.0
    %287 = vmatpush1.msra.mxu0 0.0
    %288 = vmatprep.subr.mxu0 0.0
    %289 = vmatpush1.msra.mxu0 0.0
    %290 = vmatprep.subr.mxu0 0.0
    %291 = vmatpush1.msra.mxu0 0.0
    %292 = vmatprep.subr.mxu0 0.0
    %293 = vmatpush1.msra.mxu0 0.0
    %294 = vmatprep.subr.mxu0 0.0
    %295 = vmatpush1.msra.mxu0 0.0
    %296 = vmatprep.subr.mxu0 0.0
    %297 = vmatpush1.msra.mxu0 0.0
    %298 = vmatprep.subr.mxu0 0.0
    %299 = vmatpush1.msra.mxu0 0.0
    %300 = vmatprep.subr.mxu0 0.0
    %301 = vmatpush1.msra.mxu0 0.0
    %302 = vmatprep.subr.mxu0 0.0
    %303 = vmatpush1.msra.mxu0 0.0
    %304 = vmatprep.subr.mxu0 0.0
    %305 = vmatpush1.msra.mxu0 0.0
    %306 = vmatprep.mubr.f32.mxu0 0.0
    %307 = vmatmul.mubr.f32.gmra.mrb[0].mxu0 %v226
    %v308 = vpop.f32.mrb[0].mxu0
    %v309 = vadd.f32 0.0, %v308
    %v310 = vpop.f32.mrb[0].mxu0
    %311 = vmatprep.mubr.f32.mxu0 0.0
    %312 = vmatmul.mubr.f32.gmra.mrb[0].mxu0 %v227
    %v313 = vpop.f32.mrb[0].mxu0
    %v314 = vadd.f32 0.0, %v313
    %v315 = vpop.f32.mrb[0].mxu0
    %316 = vmatprep.mubr.f32.mxu0 0.0
    %317 = vmatmul.mubr.f32.gmra.mrb[0].mxu0 %v228
    %v318 = vpop.f32.mrb[0].mxu0
    %v319 = vadd.f32 0.0, %v318
    %v320 = vpop.f32.mrb[0].mxu0
    %321 = vmatprep.mubr.f32.mxu0 0.0
    %322 = vmatmul.mubr.f32.gmra.mrb[0].mxu0 %v229
    %v323 = vpop.f32.mrb[0].mxu0
    %v324 = vadd.f32 0.0, %v323
    %v325 = vpop.f32.mrb[0].mxu0
    %326 = vmatprep.mubr.f32.mxu0 0.0
    %327 = vmatmul.mubr.f32.gmra.mrb[0].mxu0 %v230
    %v328 = vpop.f32.mrb[0].mxu0
    %v329 = vadd.f32 0.0, %v328
    %v330 = vpop.f32.mrb[0].mxu0
    %331 = vmatprep.mubr.f32.mxu0 0.0
    %332 = vmatmul.mubr.f32.gmra.mrb[0].mxu0 %v231
    %v333 = vpop.f32.mrb[0].mxu0
    %v334 = vadd.f32 0.0, %v333
    %v335 = vpop.f32.mrb[0].mxu0
    %336 = vmatprep.mubr.f32.mxu0 0.0
    %337 = vmatmul.mubr.f32.gmra.mrb[0].mxu0 %v232
    %v338 = vpop.f32.mrb[0].mxu0
    %v339 = vadd.f32 0.0, %v338
    %v340 = vpop.f32.mrb[0].mxu0
    %341 = vmatprep.mubr.f32.mxu0 0.0
    %342 = vmatmul.mubr.f32.gmra.mrb[0].mxu0 %v233
    %v343 = vpop.f32.mrb[0].mxu0
    %v344 = vadd.f32 0.0, %v343
    %v345 = vpop.f32.mrb[0].mxu0
    %346 = vmatprep.mubr.f32.mxu0 0.0
    %347 = vmatmul.mubr.f32.gmra.mrb[0].mxu0 %v234
    %v348 = vpop.f32.mrb[0].mxu0
    %v349 = vadd.f32 0.0, %v348
    %v350 = vpop.f32.mrb[0].mxu0
    %351 = vmatprep.mubr.f32.mxu0 0.0
    %352 = vmatmul.mubr.f32.gmra.mrb[0].mxu0 %v235
    %v353 = vpop.f32.mrb[0].mxu0
    %v354 = vadd.f32 0.0, %v353
    %v355 = vpop.f32.mrb[0].mxu0
    %356 = vmatprep.mubr.f32.mxu0 0.0
    %357 = vmatmul.mubr.f32.gmra.mrb[0].mxu0 %v236
    %v358 = vpop.f32.mrb[0].mxu0
    %v359 = vadd.f32 0.0, %v358
    %v360 = vpop.f32.mrb[0].mxu0
    %361 = vmatprep.mubr.f32.mxu0 0.0
    %362 = vmatmul.mubr.f32.gmra.mrb[0].mxu0 %v237
    %v363 = vpop.f32.mrb[0].mxu0
    %v364 = vadd.f32 0.0, %v363
    %v365 = vpop.f32.mrb[0].mxu0
    %366 = vmatprep.mubr.f32.mxu0 0.0
    %367 = vmatmul.mubr.f32.gmra.mrb[0].mxu0 %v238
    %v368 = vpop.f32.mrb[0].mxu0
    %v369 = vadd.f32 0.0, %v368
    %v370 = vpop.f32.mrb[0].mxu0
    %371 = vmatprep.mubr.f32.mxu0 0.0
    %372 = vmatmul.mubr.f32.gmra.mrb[0].mxu0 %v239
    %v373 = vpop.f32.mrb[0].mxu0
    %v374 = vadd.f32 0.0, %v373
    %v375 = vpop.f32.mrb[0].mxu0
    %376 = vmatprep.mubr.f32.mxu0 0.0
    %377 = vmatmul.mubr.f32.gmra.mrb[0].mxu0 %v240
    %v378 = vpop.f32.mrb[0].mxu0
    %v379 = vadd.f32 0.0, %v378
    %v380 = vpop.f32.mrb[0].mxu0
    %381 = vmatprep.mubr.f32.mxu0 0.0
    %382 = vmatmul.mubr.f32.gmra.mrb[0].mxu0 %v241
    %v383 = vpop.f32.mrb[0].mxu0
    %v384 = vadd.f32 0.0, %v383
    %v385 = vpop.f32.mrb[0].mxu0
    %386 = vdwg.mxu0
    %v387 = vld [vmem:[#allocation11] sm:$0xff]
    %v388 = vld [vmem:[#allocation11 + $0x8] sm:$0xff]
    %v389 = vld [vmem:[#allocation11 + $0x10] sm:$0xff]
    %v390 = vld [vmem:[#allocation11 + $0x18] sm:$0xff]
    %v391 = vld [vmem:[#allocation11 + $0x20] sm:$0xff]
    %v392 = vld [vmem:[#allocation11 + $0x28] sm:$0xff]
    %v393 = vld [vmem:[#allocation11 + $0x30] sm:$0xff]
    %v394 = vld [vmem:[#allocation11 + $0x38] sm:$0xff]
    %v395 = vld [vmem:[#allocation11 + $0x40] sm:$0xff]
    %v396 = vld [vmem:[#allocation11 + $0x48] sm:$0xff]
    %v397 = vld [vmem:[#allocation11 + $0x50] sm:$0xff]
    %v398 = vld [vmem:[#allocation11 + $0x58] sm:$0xff]
    %v399 = vld [vmem:[#allocation11 + $0x60] sm:$0xff]
    %v400 = vld [vmem:[#allocation11 + $0x68] sm:$0xff]
    %v401 = vld [vmem:[#allocation11 + $0x70] sm:$0xff]
    %v402 = vld [vmem:[#allocation11 + $0x78] sm:$0xff]
    %v403 = vadd.f32 %v387, %v309
    %v404 = vadd.f32 %v388, %v314
    %v405 = vadd.f32 %v389, %v319
    %v406 = vadd.f32 %v390, %v324
    %v407 = vadd.f32 %v391, %v329
    %v408 = vadd.f32 %v392, %v334
    %v409 = vadd.f32 %v393, %v339
    %v410 = vadd.f32 %v394, %v344
    %v411 = vadd.f32 %v395, %v349
    %v412 = vadd.f32 %v396, %v354
    %v413 = vadd.f32 %v397, %v359
    %v414 = vadd.f32 %v398, %v364
    %v415 = vadd.f32 %v399, %v369
    %v416 = vadd.f32 %v400, %v374
    %v417 = vadd.f32 %v401, %v379
    %v418 = vadd.f32 %v402, %v384
    %419 = vst [vmem:[#allocation11] sm:$0xff] %v403
    %420 = vst [vmem:[#allocation11 + $0x8] sm:$0xff] %v404
    %421 = vst [vmem:[#allocation11 + $0x10] sm:$0xff] %v405
    %422 = vst [vmem:[#allocation11 + $0x18] sm:$0xff] %v406
    %423 = vst [vmem:[#allocation11 + $0x20] sm:$0xff] %v407
    %424 = vst [vmem:[#allocation11 + $0x28] sm:$0xff] %v408
    %425 = vst [vmem:[#allocation11 + $0x30] sm:$0xff] %v409
    %426 = vst [vmem:[#allocation11 + $0x38] sm:$0xff] %v410
    %427 = vst [vmem:[#allocation11 + $0x40] sm:$0xff] %v411
    %428 = vst [vmem:[#allocation11 + $0x48] sm:$0xff] %v412
    %429 = vst [vmem:[#allocation11 + $0x50] sm:$0xff] %v413
    %430 = vst [vmem:[#allocation11 + $0x58] sm:$0xff] %v414
    %431 = vst [vmem:[#allocation11 + $0x60] sm:$0xff] %v415
    %432 = vst [vmem:[#allocation11 + $0x68] sm:$0xff] %v416
    %433 = vst [vmem:[#allocation11 + $0x70] sm:$0xff] %v417
    %434 = vst [vmem:[#allocation11 + $0x78] sm:$0xff] %v418
    %435 = vst [vmem:[#allocation12] sm:$0x1] %v165
    // Predicated region
    $region30: #{online_covmat_update_stream.1} parent=1 // pred_check
      %p436 = pneg %p48
    $region31: #{online_covmat_update_stream.1} parent=1 // pred_check_branch
      %438 = sbr.rel (%p436) target = $region33
    $region32: #{online_covmat_update_stream.1} parent=1 // pred_region
      %s439 = sadd.s32 %s84, 128
      %s440 = scalar_lea.smem [#allocation14], 0
      %441 = sst [smem:[%s440]] %s439
    $region33: #{online_covmat_update_stream.1} parent=1 // pred_fallthru
      _
    // Predicated region
    $region34: #{online_covmat_update_stream.1} parent=1 // pred_check
      _
    $region35: #{online_covmat_update_stream.1} parent=1 // pred_check_branch
      %443 = sbr.rel (0) target = $region37
    $region36: #{online_covmat_update_stream.1} parent=1 // pred_region
      %s445 = ssub.s32 2048, 2048
      %446 = vsyncadd [#allocation7], %s445
      %s447 = sshll.u32 [#allocation11], 4
      %s448 = int_to_ptr.vmem [resolvable:$true] %s447
      %453 = dma.vmem_to_hbm [thread:$0]  %s448, 2048, %s4, [#allocation7], 128, 128, 8
    $region37: #{online_covmat_update_stream.1} parent=1 // pred_fallthru
      _
    // Predicated region
    $region38: #{online_covmat_update_stream.1} parent=1 // pred_check
      _
    $region39: #{online_covmat_update_stream.1} parent=1 // pred_check_branch
      %455 = sbr.rel (0) target = $region41
    $region40: #{online_covmat_update_stream.1} parent=1 // pred_region
      %s457 = ssub.s32 16, 16
      %458 = vsyncadd [#allocation13], %s457
      %s460 = sshll.u32 [#allocation12], 4
      %s461 = int_to_ptr.vmem [resolvable:$true] %s460
      %463 = dma.vmem_to_hbm [thread:$0]  %s461, 16, %s5, [#allocation13]
    $region41: #{online_covmat_update_stream.1} parent=1 // pred_fallthru
      _
    // Predicated region
    $region42: #{online_covmat_update_stream.1} parent=1 // pred_check
      _
    $region43: #{online_covmat_update_stream.1} parent=1 // pred_check_branch
      %465 = sbr.rel (0) target = $region45
    $region44: #{online_covmat_update_stream.1} parent=1 // pred_region
      %s467 = ssub.s32 16, 16
      %468 = vsyncadd [#allocation8], %s467
      %471 = dma.smem_to_hbm [#allocation14], 16, %s6, [#allocation8]
    $region45: #{online_covmat_update_stream.1} parent=1 // pred_fallthru
      _
    // Predicated region
    $region46: #{online_covmat_update_stream.1} parent=1 // pred_check
      _
    $region47: #{online_covmat_update_stream.1} parent=1 // pred_check_branch
      %473 = sbr.rel (0) target = $region49
    $region48: #{online_covmat_update_stream.1} parent=1 // pred_region
      %474 = dma.done [#allocation7], 2048
    $region49: #{online_covmat_update_stream.1} parent=1 // pred_fallthru
      _
    // Predicated region
    $region50: #{online_covmat_update_stream.1} parent=1 // pred_check
      _
    $region51: #{online_covmat_update_stream.1} parent=1 // pred_check_branch
      %476 = sbr.rel (0) target = $region53
    $region52: #{online_covmat_update_stream.1} parent=1 // pred_region
      %477 = dma.done [#allocation13], 16
    $region53: #{online_covmat_update_stream.1} parent=1 // pred_fallthru
      _
    // Predicated region
    $region54: #{online_covmat_update_stream.1} parent=1 // pred_check
      _
    $region55: #{online_covmat_update_stream.1} parent=1 // pred_check_branch
      %479 = sbr.rel (0) target = $region57
    $region56: #{online_covmat_update_stream.1} parent=1 // pred_region
      %480 = dma.done [#allocation8], 16
    $region57: #{online_covmat_update_stream.1} parent=1 // pred_fallthru
      _
    %481 = sfence
    %482 = vsyncpa [#allocation6], 1
    %483 = vsyncpa [#allocation10], 1
    %484 = vsyncpa [#allocation7], 1
    %485 = vsyncpa [#allocation13], 1
    %486 = vsyncpa [#allocation8], 1
  %487 = vsyncmov [#allocation2]
  %s488 = vpop.sfrf %487
  %p489 = scmp.eq.s32.totalorder %s488, 0
  %p490 = pneg %p489
  %492 = shalt.err (%p490)

</llo_original>
